<compile_context>
chip_gen: v6e
topology: v6e:2x2x1
jax: 0.10.0
libtpu: 0.0.40
codegen_flags: <defaults>
</compile_context>

<pallas_src>
import jax
import jax.numpy as jnp
from jax.experimental import pallas as pl
from jax.experimental.pallas import tpu as pltpu


def _elu(x):
    # ELU(alpha=1).  exp() rides the EUP slot; exp(min(x,0)) - 1 is used
    # instead of expm1 to stay within universally-lowered Mosaic primitives.
    return jnp.where(x > 0, x, jnp.exp(jnp.minimum(x, 0.0)) - 1.0)


def ensemble_q_kernel(s_ref, a_ref, w1s_ref, w1a_ref, b1_ref,
                      w2_ref, b2_ref, w3_ref, b3_ref, out_ref):
    # Cast activations to bf16 in-register (no extra HBM traffic); all matmuls
    # accumulate in f32 on the MXU.
    s = s_ref[...].astype(jnp.bfloat16)          # (TB, S)
    a = a_ref[...].astype(jnp.bfloat16)          # (TB, A)

    # Layer 1: concat(state, action) @ W1  ==  s @ W1[:S] + a @ W1[S:]
    h = (jnp.dot(s, w1s_ref[...], preferred_element_type=jnp.float32)
         + jnp.dot(a, w1a_ref[...], preferred_element_type=jnp.float32)
         + b1_ref[...])                          # (TB, E*H) f32
    h = _elu(h).astype(jnp.bfloat16)

    # Layer 2: block-diagonal (E*H, E*H) — all ensemble members in one matmul.
    h = jnp.dot(h, w2_ref[...], preferred_element_type=jnp.float32) + b2_ref[...]
    h = _elu(h).astype(jnp.bfloat16)

    # Layer 3: block-diagonal (E*H, E) — member e's Q lands in lane e.
    q = jnp.dot(h, w3_ref[...], preferred_element_type=jnp.float32) + b3_ref[...]

    # Ensemble reduction='min' over the E lanes.
    out_ref[...] = jnp.min(q, axis=-1, keepdims=True).astype(out_ref.dtype)


def _pick_tile_b(B, cap=512):
    """Largest multiple-of-8 divisor of B that is <= cap (B itself if small)."""
    if B <= cap:
        return B
    for t in range(cap - cap % 8, 7, -8):
        if B % t == 0:
            return t
    return B


def ensemble_q_forward(state, action, packed_params, *, tile_b=None):
    """state: (B, S), action: (B, A) -> (B, 1) = min_e MLP_e([state, action])."""
    w1s, w1a, b1p, w2p, b2p, w3p, b3p = packed_params
    B, S = state.shape
    _, A = action.shape
    EH = w1s.shape[1]
    E = w3p.shape[1]

    if tile_b is None:
        tile_b = _pick_tile_b(B)
    assert B % tile_b == 0, (B, tile_b)
    assert tile_b == B or tile_b % 8 == 0, tile_b

    grid = (B // tile_b,)
    return pl.pallas_call(
        ensemble_q_kernel,
        out_shape=jax.ShapeDtypeStruct((B, 1), jnp.float32),
        grid_spec=pltpu.PrefetchScalarGridSpec(
            num_scalar_prefetch=0,
            grid=grid,
            in_specs=[
                pl.BlockSpec((tile_b, S), lambda i: (i, 0)),   # state tile
                pl.BlockSpec((tile_b, A), lambda i: (i, 0)),   # action tile
                pl.BlockSpec((S, EH), lambda i: (0, 0)),       # W1[:S]  (bf16)
                pl.BlockSpec((A, EH), lambda i: (0, 0)),       # W1[S:]  (bf16)
                pl.BlockSpec((1, EH), lambda i: (0, 0)),       # b1      (f32)
                pl.BlockSpec((EH, EH), lambda i: (0, 0)),      # W2 block-diag
                pl.BlockSpec((1, EH), lambda i: (0, 0)),       # b2
                pl.BlockSpec((EH, E), lambda i: (0, 0)),       # W3 block-diag
                pl.BlockSpec((1, E), lambda i: (0, 0)),        # b3
            ],
            out_specs=pl.BlockSpec((tile_b, 1), lambda i: (i, 0)),
        ),
        compiler_params=pltpu.CompilerParams(
            dimension_semantics=("parallel",)),
    )(state, action, w1s, w1a, b1p, w2p, b2p, w3p, b3p)


def init_params(key, state_dim, action_dim, hidden, ensemble_size):
    """Deterministic synthetic init (uniform, fan-in scaled, like torch Linear)."""
    ks = jax.random.split(key, 6)

    def u(k, shape, fan_in):
        lim = 1.0 / jnp.sqrt(jnp.float32(fan_in))
        return jax.random.uniform(k, shape, jnp.float32, -lim, lim)

    E, D, H = ensemble_size, state_dim + action_dim, hidden
    w1 = u(ks[0], (E, D, H), D)
    b1 = u(ks[1], (E, 1, H), D)
    w2 = u(ks[2], (E, H, H), H)
    b2 = u(ks[3], (E, 1, H), H)
    w3 = u(ks[4], (E, H, 1), H)
    b3 = u(ks[5], (E, 1, 1), H)
    return (w1, b1, w2, b2, w3, b3)


def pack_params(params, state_dim, *, weight_dtype=jnp.bfloat16):
    """One-time packing into lane-dense / block-diagonal form (not per call)."""
    w1, b1, w2, b2, w3, b3 = params
    E, D, H = w1.shape
    EH = E * H

    # W1: (E, D, H) -> (D, E*H) column concat; split into state/action rows.
    w1p = jnp.transpose(w1, (1, 0, 2)).reshape(D, EH)
    w1s = w1p[:state_dim].astype(weight_dtype)
    w1a = w1p[state_dim:].astype(weight_dtype)
    b1p = b1.reshape(1, EH).astype(jnp.float32)

    # W2: block-diagonal (E*H, E*H).
    w2p = jnp.zeros((EH, EH), jnp.float32)
    for e in range(E):
        w2p = w2p.at[e * H:(e + 1) * H, e * H:(e + 1) * H].set(w2[e])
    w2p = w2p.astype(weight_dtype)
    b2p = b2.reshape(1, EH).astype(jnp.float32)

    # W3: block-diagonal (E*H, E): column e holds member e's output weights.
    w3p = jnp.zeros((EH, E), jnp.float32)
    for e in range(E):
        w3p = w3p.at[e * H:(e + 1) * H, e].set(w3[e, :, 0])
    w3p = w3p.astype(weight_dtype)
    b3p = b3.reshape(1, E).astype(jnp.float32)

    return (w1s, w1a, b1p, w2p, b2p, w3p, b3p)


def reference_forward(state, action, params):
    """Pure-f32 JAX reference matching the PyTorch module."""
    x = jnp.concatenate([state, action], axis=-1).astype(jnp.float32)
    w1, b1, w2, b2, w3, b3 = params
    qs = []
    for e in range(w1.shape[0]):
        h = _elu(x @ w1[e] + b1[e])
        h = _elu(h @ w2[e] + b2[e])
        qs.append(h @ w3[e] + b3[e])
    q = qs[0]
    for e in range(1, len(qs)):
        q = jnp.minimum(q, qs[e])
    return q


if __name__ == "__main__":
    # Small, forward-consistent shapes.
    S, A, H, E = 16, 8, 32, 2
    key = jax.random.PRNGKey(0)
    k_state, k_action, k_params = jax.random.split(key, 3)

    params = init_params(k_params, S, A, H, E)
    packed = pack_params(params, S)            # pack once, outside the forward

    # Case 1: small batch, single grid step.
    B = 16
    state = jax.random.normal(k_state, (B, S), jnp.float32)
    action = jax.random.normal(k_action, (B, A), jnp.float32)
    out = jax.block_until_ready(ensemble_q_forward(state, action, packed))
    ref = reference_forward(state, action, params)
    assert out.shape == (B, 1), out.shape
    # bf16 matmul operands (f32 accumulation) -> loosened tolerance vs f32 ref.
    assert jnp.allclose(out, ref, atol=2e-2, rtol=2e-2), float(jnp.max(jnp.abs(out - ref)))

    # Case 2: multi-step grid (exercises batch tiling / pipelining path).
    B2, tile_b = 64, 16
    k_s2, k_a2 = jax.random.split(jax.random.PRNGKey(1))
    state2 = jax.random.normal(k_s2, (B2, S), jnp.float32)
    action2 = jax.random.normal(k_a2, (B2, A), jnp.float32)
    out2 = jax.block_until_ready(
        ensemble_q_forward(state2, action2, packed, tile_b=tile_b))
    ref2 = reference_forward(state2, action2, params)
    assert out2.shape == (B2, 1), out2.shape
    assert jnp.allclose(out2, ref2, atol=2e-2, rtol=2e-2), float(jnp.max(jnp.abs(out2 - ref2)))

    print("KERNEL_OK")
</pallas_src>

<mosaic_0001>
module attributes {stable_mosaic.version = 11 : i64} {
  func.func @ensemble_q_kernel(%arg0: i32, %arg1: memref<16x16xf32, #tpu.memory_space<vmem>>, %arg2: memref<16x8xf32, #tpu.memory_space<vmem>>, %arg3: memref<16x64xbf16, #tpu.memory_space<vmem>>, %arg4: memref<8x64xbf16, #tpu.memory_space<vmem>>, %arg5: memref<1x64xf32, #tpu.memory_space<vmem>>, %arg6: memref<64x64xbf16, #tpu.memory_space<vmem>>, %arg7: memref<1x64xf32, #tpu.memory_space<vmem>>, %arg8: memref<64x2xbf16, #tpu.memory_space<vmem>>, %arg9: memref<1x2xf32, #tpu.memory_space<vmem>>, %arg10: memref<16x1xf32, #tpu.memory_space<vmem>>) attributes {dimension_semantics = [#tpu.dimension_semantics<parallel>], iteration_bounds = array<i64: 1>, scalar_prefetch = 0 : i64, scratch_operands = 0 : i64, tpu.core_type = #tpu.core_type<tc>, window_params = [{transform_indices = @transform_0, window_bounds = array<i64: 16, 16>}, {transform_indices = @transform_1, window_bounds = array<i64: 16, 8>}, {pipeline_mode = #tpu.pipeline_mode<synchronous>, transform_indices = @transform_2, window_bounds = array<i64: 16, 64>}, {pipeline_mode = #tpu.pipeline_mode<synchronous>, transform_indices = @transform_3, window_bounds = array<i64: 8, 64>}, {pipeline_mode = #tpu.pipeline_mode<synchronous>, transform_indices = @transform_4, window_bounds = array<i64: 1, 64>}, {pipeline_mode = #tpu.pipeline_mode<synchronous>, transform_indices = @transform_5, window_bounds = array<i64: 64, 64>}, {pipeline_mode = #tpu.pipeline_mode<synchronous>, transform_indices = @transform_6, window_bounds = array<i64: 1, 64>}, {pipeline_mode = #tpu.pipeline_mode<synchronous>, transform_indices = @transform_7, window_bounds = array<i64: 64, 2>}, {pipeline_mode = #tpu.pipeline_mode<synchronous>, transform_indices = @transform_8, window_bounds = array<i64: 1, 2>}, {transform_indices = @transform_9, window_bounds = array<i64: 16, 1>}]} {
    %c0 = arith.constant 0 : index
    %c0_0 = arith.constant 0 : index
    %0 = vector.load %arg1[%c0, %c0_0] : memref<16x16xf32, #tpu.memory_space<vmem>>, vector<16x16xf32>
    %1 = arith.truncf %0 : vector<16x16xf32> to vector<16x16xbf16>
    %c0_1 = arith.constant 0 : index
    %c0_2 = arith.constant 0 : index
    %2 = vector.load %arg2[%c0_1, %c0_2] : memref<16x8xf32, #tpu.memory_space<vmem>>, vector<16x8xf32>
    %3 = arith.truncf %2 : vector<16x8xf32> to vector<16x8xbf16>
    %c0_3 = arith.constant 0 : index
    %c0_4 = arith.constant 0 : index
    %4 = vector.load %arg3[%c0_3, %c0_4] : memref<16x64xbf16, #tpu.memory_space<vmem>>, vector<16x64xbf16>
    %cst = arith.constant dense<0.000000e+00> : vector<16x64xf32>
    %5 = tpu.matmul %1, %4, %cst {dimension_numbers = #tpu.dot_dimension_numbers<[1], [0], [0], [1], [0, 0, 1, 1], [], []>} : vector<16x16xbf16>, vector<16x64xbf16>, vector<16x64xf32> -> vector<16x64xf32>
    %c0_5 = arith.constant 0 : index
    %c0_6 = arith.constant 0 : index
    %6 = vector.load %arg4[%c0_5, %c0_6] : memref<8x64xbf16, #tpu.memory_space<vmem>>, vector<8x64xbf16>
    %cst_7 = arith.constant dense<0.000000e+00> : vector<16x64xf32>
    %7 = tpu.matmul %3, %6, %cst_7 {dimension_numbers = #tpu.dot_dimension_numbers<[1], [0], [0], [1], [0, 0, 1, 1], [], []>} : vector<16x8xbf16>, vector<8x64xbf16>, vector<16x64xf32> -> vector<16x64xf32>
    %8 = arith.addf %5, %7 : vector<16x64xf32>
    %c0_8 = arith.constant 0 : index
    %c0_9 = arith.constant 0 : index
    %9 = vector.load %arg5[%c0_8, %c0_9] : memref<1x64xf32, #tpu.memory_space<vmem>>, vector<1x64xf32>
    %10 = vector.broadcast %9 : vector<1x64xf32> to vector<16x64xf32>
    %11 = arith.addf %8, %10 : vector<16x64xf32>
    %cst_10 = arith.constant 0.000000e+00 : f32
    %12 = vector.broadcast %cst_10 : f32 to vector<16x64xf32>
    %13 = arith.cmpf ogt, %11, %12 : vector<16x64xf32>
    %cst_11 = arith.constant 0.000000e+00 : f32
    %14 = vector.broadcast %cst_11 : f32 to vector<16x64xf32>
    %15 = arith.minimumf %11, %14 : vector<16x64xf32>
    %16 = math.exp %15 : vector<16x64xf32>
    %cst_12 = arith.constant 1.000000e+00 : f32
    %17 = vector.broadcast %cst_12 : f32 to vector<16x64xf32>
    %18 = arith.subf %16, %17 : vector<16x64xf32>
    %19 = arith.select %13, %11, %18 : vector<16x64xi1>, vector<16x64xf32>
    %20 = arith.truncf %19 : vector<16x64xf32> to vector<16x64xbf16>
    %c0_13 = arith.constant 0 : index
    %c0_14 = arith.constant 0 : index
    %21 = vector.load %arg6[%c0_13, %c0_14] : memref<64x64xbf16, #tpu.memory_space<vmem>>, vector<64x64xbf16>
    %cst_15 = arith.constant dense<0.000000e+00> : vector<16x64xf32>
    %22 = tpu.matmul %20, %21, %cst_15 {dimension_numbers = #tpu.dot_dimension_numbers<[1], [0], [0], [1], [0, 0, 1, 1], [], []>} : vector<16x64xbf16>, vector<64x64xbf16>, vector<16x64xf32> -> vector<16x64xf32>
    %c0_16 = arith.constant 0 : index
    %c0_17 = arith.constant 0 : index
    %23 = vector.load %arg7[%c0_16, %c0_17] : memref<1x64xf32, #tpu.memory_space<vmem>>, vector<1x64xf32>
    %24 = vector.broadcast %23 : vector<1x64xf32> to vector<16x64xf32>
    %25 = arith.addf %22, %24 : vector<16x64xf32>
    %cst_18 = arith.constant 0.000000e+00 : f32
    %26 = vector.broadcast %cst_18 : f32 to vector<16x64xf32>
    %27 = arith.cmpf ogt, %25, %26 : vector<16x64xf32>
    %cst_19 = arith.constant 0.000000e+00 : f32
    %28 = vector.broadcast %cst_19 : f32 to vector<16x64xf32>
    %29 = arith.minimumf %25, %28 : vector<16x64xf32>
    %30 = math.exp %29 : vector<16x64xf32>
    %cst_20 = arith.constant 1.000000e+00 : f32
    %31 = vector.broadcast %cst_20 : f32 to vector<16x64xf32>
    %32 = arith.subf %30, %31 : vector<16x64xf32>
    %33 = arith.select %27, %25, %32 : vector<16x64xi1>, vector<16x64xf32>
    %34 = arith.truncf %33 : vector<16x64xf32> to vector<16x64xbf16>
    %c0_21 = arith.constant 0 : index
    %c0_22 = arith.constant 0 : index
    %35 = vector.load %arg8[%c0_21, %c0_22] : memref<64x2xbf16, #tpu.memory_space<vmem>>, vector<64x2xbf16>
    %cst_23 = arith.constant dense<0.000000e+00> : vector<16x2xf32>
    %36 = tpu.matmul %34, %35, %cst_23 {dimension_numbers = #tpu.dot_dimension_numbers<[1], [0], [0], [1], [0, 0, 1, 1], [], []>} : vector<16x64xbf16>, vector<64x2xbf16>, vector<16x2xf32> -> vector<16x2xf32>
    %c0_24 = arith.constant 0 : index
    %c0_25 = arith.constant 0 : index
    %37 = vector.load %arg9[%c0_24, %c0_25] : memref<1x2xf32, #tpu.memory_space<vmem>>, vector<1x2xf32>
    %38 = vector.broadcast %37 : vector<1x2xf32> to vector<16x2xf32>
    %39 = arith.addf %36, %38 : vector<16x2xf32>
    %cst_26 = arith.constant dense<0x7F800000> : vector<16xf32>
    %40 = vector.multi_reduction <minimumf>, %39, %cst_26 [1] : vector<16x2xf32> to vector<16xf32>
    %41 = vector.shape_cast %40 : vector<16xf32> to vector<16x1xf32>
    %c0_27 = arith.constant 0 : index
    %c0_28 = arith.constant 0 : index
    %42 = vector.load %arg10[%c0_27, %c0_28] : memref<16x1xf32, #tpu.memory_space<vmem>>, vector<16x1xf32>
    tpu.vector_store %arg10[%c0_27, %c0_28], %41 {strides = array<i32>} : memref<16x1xf32, #tpu.memory_space<vmem>>, vector<16x1xf32>,
    return
  }
  func.func @transform_0(%arg0: i32) -> (i32, i32) {
    %c0_i32 = arith.constant 0 : i32
    %c0_i32_0 = arith.constant 0 : i32
    return %arg0, %c0_i32 : i32, i32
  }
  func.func @transform_1(%arg0: i32) -> (i32, i32) {
    %c0_i32 = arith.constant 0 : i32
    %c0_i32_0 = arith.constant 0 : i32
    return %arg0, %c0_i32 : i32, i32
  }
  func.func @transform_2(%arg0: i32) -> (i32, i32) {
    %c0_i32 = arith.constant 0 : i32
    %c0_i32_0 = arith.constant 0 : i32
    %c0_i32_1 = arith.constant 0 : i32
    return %c0_i32, %c0_i32_0 : i32, i32
  }
  func.func @transform_3(%arg0: i32) -> (i32, i32) {
    %c0_i32 = arith.constant 0 : i32
    %c0_i32_0 = arith.constant 0 : i32
    %c0_i32_1 = arith.constant 0 : i32
    return %c0_i32, %c0_i32_0 : i32, i32
  }
  func.func @transform_4(%arg0: i32) -> (i32, i32) {
    %c0_i32 = arith.constant 0 : i32
    %c0_i32_0 = arith.constant 0 : i32
    %c0_i32_1 = arith.constant 0 : i32
    return %c0_i32, %c0_i32_0 : i32, i32
  }
  func.func @transform_5(%arg0: i32) -> (i32, i32) {
    %c0_i32 = arith.constant 0 : i32
    %c0_i32_0 = arith.constant 0 : i32
    %c0_i32_1 = arith.constant 0 : i32
    return %c0_i32, %c0_i32_0 : i32, i32
  }
  func.func @transform_6(%arg0: i32) -> (i32, i32) {
    %c0_i32 = arith.constant 0 : i32
    %c0_i32_0 = arith.constant 0 : i32
    %c0_i32_1 = arith.constant 0 : i32
    return %c0_i32, %c0_i32_0 : i32, i32
  }
  func.func @transform_7(%arg0: i32) -> (i32, i32) {
    %c0_i32 = arith.constant 0 : i32
    %c0_i32_0 = arith.constant 0 : i32
    %c0_i32_1 = arith.constant 0 : i32
    return %c0_i32, %c0_i32_0 : i32, i32
  }
  func.func @transform_8(%arg0: i32) -> (i32, i32) {
    %c0_i32 = arith.constant 0 : i32
    %c0_i32_0 = arith.constant 0 : i32
    %c0_i32_1 = arith.constant 0 : i32
    return %c0_i32, %c0_i32_0 : i32, i32
  }
  func.func @transform_9(%arg0: i32) -> (i32, i32) {
    %c0_i32 = arith.constant 0 : i32
    %c0_i32_0 = arith.constant 0 : i32
    return %arg0, %c0_i32 : i32, i32
  }
}

</mosaic_0001>

<llo_original>
// kernel: tpu_custom_call.1
$region0: #{tpu_custom_call.1}
  #allocation0 [shape = 'u32[]', space=smem, size = 0x4, offset = 0x4, fixed_abs, tag = 'smem constant byte address 0x4 - core index']
  #allocation1 [shape = 'u32[144,128]{1,0:T(1,128)}', space=vmem, size = 0x12000, scoped, tag = 'internal scratch']
  %s0 = inlined_call_operand.vmem [shape: f32[16,16], index: 0, kind: input, shape index: {}]
  %s1 = inlined_call_operand.vmem [shape: f32[16,8], index: 1, kind: input, shape index: {}]
  %s2 = inlined_call_operand.vmem [shape: bf16[16,64], index: 2, kind: input, shape index: {}]
  %s3 = inlined_call_operand.vmem [shape: bf16[8,64], index: 3, kind: input, shape index: {}]
  %s4 = inlined_call_operand.vmem [shape: f32[1,64], index: 4, kind: input, shape index: {}]
  %s5 = inlined_call_operand.vmem [shape: bf16[64,64], index: 5, kind: input, shape index: {}]
  %s6 = inlined_call_operand.vmem [shape: f32[1,64], index: 6, kind: input, shape index: {}]
  %s7 = inlined_call_operand.vmem [shape: bf16[64,2], index: 7, kind: input, shape index: {}]
  %s8 = inlined_call_operand.vmem [shape: f32[1,2], index: 8, kind: input, shape index: {}]
  %s9 = inlined_call_operand.vmem [shape: f32[16,1], index: 9, kind: output, shape index: {}]
  %s10 = sld [smem:[#allocation0]]
  $region46: #{tpu_custom_call.1} parent=0
    _
  %s12 = ssub.s32 1, %s10
  %s13 = scalar_select 0, %s12, %s10
  // Predicated region
  $region2: #{tpu_custom_call.1} parent=0 // pred_check
    _
  $region3: #{tpu_custom_call.1} parent=0 // pred_check_branch
    %15 = sbr.rel (0) target = $region5
  $region4: #{tpu_custom_call.1} parent=0 // pred_region
    _
  $region5: #{tpu_custom_call.1} parent=0 // pred_fallthru
    _
  // Predicated region
  $region6: #{tpu_custom_call.1} parent=0 // pred_check
    _
  $region7: #{tpu_custom_call.1} parent=0 // pred_check_branch
    %17 = sbr.rel (0) target = $region9
  $region8: #{tpu_custom_call.1} parent=0 // pred_region
    _
  $region9: #{tpu_custom_call.1} parent=0 // pred_fallthru
    _
  // Predicated region
  $region10: #{tpu_custom_call.1} parent=0 // pred_check
    _
  $region11: #{tpu_custom_call.1} parent=0 // pred_check_branch
    %19 = sbr.rel (0) target = $region13
  $region12: #{tpu_custom_call.1} parent=0 // pred_region
    _
  $region13: #{tpu_custom_call.1} parent=0 // pred_fallthru
    _
  // Predicated region
  $region14: #{tpu_custom_call.1} parent=0 // pred_check
    _
  $region15: #{tpu_custom_call.1} parent=0 // pred_check_branch
    %21 = sbr.rel (0) target = $region17
  $region16: #{tpu_custom_call.1} parent=0 // pred_region
    _
  $region17: #{tpu_custom_call.1} parent=0 // pred_fallthru
    _
  // Predicated region
  $region18: #{tpu_custom_call.1} parent=0 // pred_check
    _
  $region19: #{tpu_custom_call.1} parent=0 // pred_check_branch
    %23 = sbr.rel (0) target = $region21
  $region20: #{tpu_custom_call.1} parent=0 // pred_region
    _
  $region21: #{tpu_custom_call.1} parent=0 // pred_fallthru
    _
  // Predicated region
  $region22: #{tpu_custom_call.1} parent=0 // pred_check
    _
  $region23: #{tpu_custom_call.1} parent=0 // pred_check_branch
    %25 = sbr.rel (0) target = $region25
  $region24: #{tpu_custom_call.1} parent=0 // pred_region
    _
  $region25: #{tpu_custom_call.1} parent=0 // pred_fallthru
    _
  // Predicated region
  $region26: #{tpu_custom_call.1} parent=0 // pred_check
    _
  $region27: #{tpu_custom_call.1} parent=0 // pred_check_branch
    %27 = sbr.rel (0) target = $region29
  $region28: #{tpu_custom_call.1} parent=0 // pred_region
    _
  $region29: #{tpu_custom_call.1} parent=0 // pred_fallthru
    _
  // Predicated region
  $region30: #{tpu_custom_call.1} parent=0 // pred_check
    _
  $region31: #{tpu_custom_call.1} parent=0 // pred_check_branch
    %29 = sbr.rel (0) target = $region33
  $region32: #{tpu_custom_call.1} parent=0 // pred_region
    _
  $region33: #{tpu_custom_call.1} parent=0 // pred_fallthru
    _
  // Predicated region
  $region34: #{tpu_custom_call.1} parent=0 // pred_check
    _
  $region35: #{tpu_custom_call.1} parent=0 // pred_check_branch
    %31 = sbr.rel (0) target = $region37
  $region36: #{tpu_custom_call.1} parent=0 // pred_region
    _
  $region37: #{tpu_custom_call.1} parent=0 // pred_fallthru
    _
  %v33 = vld [vmem:[%s0] sm:$0xff]
  %v34 = vld [vmem:[%s0 + $0x8] sm:$0xff]
  %v35 = vpack.c.bf16 %v34, %v33
  %v36 = vld [vmem:[%s1] sm:$0xff]
  %v37 = vld [vmem:[%s1 + $0x8] sm:$0xff]
  %v38 = vpack.c.bf16 %v37, %v36
  %v39 = vld [vmem:[%s2] sm:$0xf]
  %v40 = vld [vmem:[%s2 + $0x4] sm:$0xf]
  %v41 = vld [vmem:[%s3] sm:$0xf]
  %vm42 = vcmask 64512
  %v44 = vsel %vm42, %v38, 0
  %vm46 = vcmask 1043456
  %v48 = vsel %vm46, %v41, 0
  %50 = vmatprep.subr.bf16.mxu0 0
  %51 = vmatpush1.bf16.msra.mxu0 0
  %52 = vmatprep.subr.bf16.mxu0 0
  %53 = vmatpush1.bf16.msra.mxu0 0
  %54 = vmatprep.subr.bf16.mxu0 0
  %55 = vmatpush1.bf16.msra.mxu0 0
  %56 = vmatprep.subr.bf16.mxu0 0
  %57 = vmatpush1.bf16.msra.mxu0 0
  %58 = vmatprep.subr.bf16.mxu0 0
  %59 = vmatpush1.bf16.msra.mxu0 0
  %60 = vmatprep.subr.bf16.mxu0 0
  %61 = vmatpush1.bf16.msra.mxu0 0
  %62 = vmatprep.subr.bf16.mxu0 0
  %63 = vmatpush1.bf16.msra.mxu0 0
  %64 = vmatprep.subr.bf16.mxu0 0
  %65 = vmatpush1.bf16.msra.mxu0 %v48
  %66 = vmatprep.subr.bf16.mxu0 0
  %67 = vmatpush2.bf16.msra.mxu0 0
  %68 = vmatprep.subr.bf16.mxu0 0
  %69 = vmatpush2.bf16.msra.mxu0 0
  %70 = vmatprep.subr.bf16.mxu0 0
  %71 = vmatpush2.bf16.msra.mxu0 0
  %72 = vmatprep.subr.bf16.mxu0 0
  %73 = vmatpush2.bf16.msra.mxu0 0
  %74 = vmatprep.subr.bf16.mxu0 0
  %75 = vmatpush2.bf16.msra.mxu0 0
  %76 = vmatprep.subr.bf16.mxu0 0
  %77 = vmatpush2.bf16.msra.mxu0 0
  %78 = vmatprep.subr.bf16.mxu0 0
  %79 = vmatpush2.bf16.msra.mxu0 0
  %80 = vmatprep.subr.bf16.mxu0 0
  %81 = vmatpush2.bf16.msra.mxu0 0
  %82 = vmatprep.mubr.bf16.mxu0 0
  %83 = vmatmul.mubr.bf16.gmra.mxu0 %v44
  %v84 = vpop.f32.mrf.mxu0
  %v85 = vadd.f32 0.0, %v84
  %v86 = vpop.f32.mrf.mxu0
  %v87 = vpop.f32.mrf.mxu0
  %v88 = vadd.f32 0.0, %v87
  %v89 = vpop.f32.mrf.mxu0
  %90 = vdwg.mxu0
  %v93 = vunpack.c.l.b16 %v39
  %v94 = vunpack.c.l.b16 %v40
  %v95 = vpack.c.b16 %v94, %v93
  %vm97 = vcmask 130048
  %v99 = vsel %vm97, %v35, 0
  %101 = vmatprep.subr.bf16.mxu0 0
  %102 = vmatpush1.bf16.msra.mxu0 0
  %103 = vmatprep.subr.bf16.mxu0 0
  %104 = vmatpush1.bf16.msra.mxu0 0
  %105 = vmatprep.subr.bf16.mxu0 0
  %106 = vmatpush1.bf16.msra.mxu0 0
  %107 = vmatprep.subr.bf16.mxu0 0
  %108 = vmatpush1.bf16.msra.mxu0 0
  %109 = vmatprep.subr.bf16.mxu0 0
  %110 = vmatpush1.bf16.msra.mxu0 0
  %111 = vmatprep.subr.bf16.mxu0 0
  %112 = vmatpush1.bf16.msra.mxu0 0
  %113 = vmatprep.subr.bf16.mxu0 0
  %114 = vmatpush1.bf16.msra.mxu0 0
  %115 = vmatprep.subr.bf16.mxu0 0
  %116 = vmatpush1.bf16.msra.mxu0 %v95
  %117 = vmatprep.subr.bf16.mxu0 0
  %118 = vmatpush2.bf16.msra.mxu0 0
  %119 = vmatprep.subr.bf16.mxu0 0
  %120 = vmatpush2.bf16.msra.mxu0 0
  %121 = vmatprep.subr.bf16.mxu0 0
  %122 = vmatpush2.bf16.msra.mxu0 0
  %123 = vmatprep.subr.bf16.mxu0 0
  %124 = vmatpush2.bf16.msra.mxu0 0
  %125 = vmatprep.subr.bf16.mxu0 0
  %126 = vmatpush2.bf16.msra.mxu0 0
  %127 = vmatprep.subr.bf16.mxu0 0
  %128 = vmatpush2.bf16.msra.mxu0 0
  %129 = vmatprep.subr.bf16.mxu0 0
  %130 = vmatpush2.bf16.msra.mxu0 0
  %131 = vmatprep.subr.bf16.mxu0 0
  %132 = vmatpush2.bf16.msra.mxu0 0
  %133 = vmatprep.mubr.bf16.mxu0 0
  %134 = vmatmul.mubr.bf16.gmra.mxu0 %v99
  %v135 = vpop.f32.mrf.mxu0
  %v136 = vadd.f32 %v85, %v135
  %v137 = vpop.f32.mrf.mxu0
  %v138 = vpop.f32.mrf.mxu0
  %v139 = vadd.f32 %v88, %v138
  %v140 = vpop.f32.mrf.mxu0
  %141 = vdwg.mxu0
  %v142 = vld [vmem:[%s4] sm:$0x1]
  %v144 = vlaneseq
  %v145 = vshrl.u32 %v144, 7
  %v146 = vsub.s32 0, %v145
  %v147 = vrot.slane %v142, %v146
  %v149 = vadd.f32 %v136, %v147
  %v150 = vadd.f32 %v139, %v147
  %vm151 = vcmp.gt.f32.partialorder %v149, 0.0
  %vm152 = vcmp.gt.f32.partialorder %v150, 0.0
  %v153 = vmin.f32 %v149, 0.0
  %v154 = vmin.f32 %v150, 0.0
  %v155 = vmul.f32 %v153, 1.442695
  %v156 = vpow.pop %v155
  %v157 = vmul.f32 %v154, 1.442695
  %v158 = vpow.pop %v157
  %v159 = vsub.f32 %v156, 1.0
  %v160 = vsub.f32 %v158, 1.0
  %v161 = vsel %vm151, %v149, %v159
  %v162 = vsel %vm152, %v150, %v160
  %v163 = vpack.c.bf16 %v162, %v161
  %v164 = vld [vmem:[%s5] sm:$0xf]
  %v165 = vld [vmem:[%s5 + $0x4] sm:$0xf]
  %v166 = vld [vmem:[%s5 + $0x8] sm:$0xf]
  %v167 = vld [vmem:[%s5 + $0xc] sm:$0xf]
  %v168 = vld [vmem:[%s5 + $0x10] sm:$0xf]
  %v169 = vld [vmem:[%s5 + $0x14] sm:$0xf]
  %v170 = vld [vmem:[%s5 + $0x18] sm:$0xf]
  %v171 = vld [vmem:[%s5 + $0x1c] sm:$0xf]
  %v172 = vld [vmem:[%s6] sm:$0x1]
  %v174 = vlaneseq
  %v175 = vshrl.u32 %v174, 7
  %v176 = vsub.s32 0, %v175
  %v177 = vrot.slane %v172, %v176
  %v187 = vunpack.c.l.b16 %v164
  %v188 = vunpack.c.l.b16 %v165
  %v189 = vunpack.c.l.b16 %v166
  %v190 = vunpack.c.l.b16 %v167
  %v191 = vunpack.c.l.b16 %v168
  %v192 = vunpack.c.l.b16 %v169
  %v193 = vunpack.c.l.b16 %v170
  %v194 = vunpack.c.l.b16 %v171
  %v195 = vpack.c.b16 %v188, %v187
  %v196 = vpack.c.b16 %v190, %v189
  %v197 = vpack.c.b16 %v192, %v191
  %v198 = vpack.c.b16 %v194, %v193
  %vm203 = vcmask 523264
  %v205 = vsel %vm203, %v163, 0
  %207 = vmatprep.subr.bf16.mxu0 0
  %208 = vmatpush1.bf16.msra.mxu0 0
  %209 = vmatprep.subr.bf16.mxu0 0
  %210 = vmatpush1.bf16.msra.mxu0 0
  %211 = vmatprep.subr.bf16.mxu0 0
  %212 = vmatpush1.bf16.msra.mxu0 0
  %213 = vmatprep.subr.bf16.mxu0 0
  %214 = vmatpush1.bf16.msra.mxu0 0
  %215 = vmatprep.subr.bf16.mxu0 0
  %216 = vmatpush1.bf16.msra.mxu0 %v198
  %217 = vmatprep.subr.bf16.mxu0 0
  %218 = vmatpush1.bf16.msra.mxu0 %v197
  %219 = vmatprep.subr.bf16.mxu0 0
  %220 = vmatpush1.bf16.msra.mxu0 %v196
  %221 = vmatprep.subr.bf16.mxu0 0
  %222 = vmatpush1.bf16.msra.mxu0 %v195
  %223 = vmatprep.subr.bf16.mxu0 0
  %224 = vmatpush2.bf16.msra.mxu0 0
  %225 = vmatprep.subr.bf16.mxu0 0
  %226 = vmatpush2.bf16.msra.mxu0 0
  %227 = vmatprep.subr.bf16.mxu0 0
  %228 = vmatpush2.bf16.msra.mxu0 0
  %229 = vmatprep.subr.bf16.mxu0 0
  %230 = vmatpush2.bf16.msra.mxu0 0
  %231 = vmatprep.subr.bf16.mxu0 0
  %232 = vmatpush2.bf16.msra.mxu0 0
  %233 = vmatprep.subr.bf16.mxu0 0
  %234 = vmatpush2.bf16.msra.mxu0 0
  %235 = vmatprep.subr.bf16.mxu0 0
  %236 = vmatpush2.bf16.msra.mxu0 0
  %237 = vmatprep.subr.bf16.mxu0 0
  %238 = vmatpush2.bf16.msra.mxu0 0
  %239 = vmatprep.mubr.bf16.mxu0 0
  %240 = vmatmul.mubr.bf16.gmra.mxu0 %v205
  %v241 = vpop.f32.mrf.mxu0
  %v242 = vadd.f32 %v177, %v241
  %v243 = vpop.f32.mrf.mxu0
  %v244 = vpop.f32.mrf.mxu0
  %v245 = vadd.f32 %v177, %v244
  %v246 = vpop.f32.mrf.mxu0
  %247 = vdwg.mxu0
  %vm248 = vcmp.gt.f32.partialorder %v242, 0.0
  %vm249 = vcmp.gt.f32.partialorder %v245, 0.0
  %v250 = vmin.f32 %v242, 0.0
  %v251 = vmin.f32 %v245, 0.0
  %v252 = vmul.f32 %v250, 1.442695
  %v253 = vpow.pop %v252
  %v254 = vmul.f32 %v251, 1.442695
  %v255 = vpow.pop %v254
  %v256 = vsub.f32 %v253, 1.0
  %v257 = vsub.f32 %v255, 1.0
  %v258 = vsel %vm248, %v242, %v256
  %v259 = vsel %vm249, %v245, %v257
  %v260 = vpack.c.bf16 %v259, %v258
  %v261 = vld [vmem:[%s7] sm:$0xf]
  %v262 = vld [vmem:[%s7 + $0x4] sm:$0xf]
  %v263 = vld [vmem:[%s7 + $0x8] sm:$0xf]
  %v264 = vld [vmem:[%s7 + $0xc] sm:$0xf]
  %v265 = vld [vmem:[%s7 + $0x10] sm:$0xf]
  %v266 = vld [vmem:[%s7 + $0x14] sm:$0xf]
  %v267 = vld [vmem:[%s7 + $0x18] sm:$0xf]
  %v268 = vld [vmem:[%s7 + $0x1c] sm:$0xf]
  %v269 = vld [vmem:[%s8] sm:$0x1]
  %v271 = vlaneseq
  %v272 = vshrl.u32 %v271, 7
  %v273 = vsub.s32 0, %v272
  %v274 = vrot.slane %v269, %v273
  %v284 = vunpack.c.l.b16 %v261
  %v285 = vunpack.c.l.b16 %v262
  %v286 = vunpack.c.l.b16 %v263
  %v287 = vunpack.c.l.b16 %v264
  %v288 = vunpack.c.l.b16 %v265
  %v289 = vunpack.c.l.b16 %v266
  %v290 = vunpack.c.l.b16 %v267
  %v291 = vunpack.c.l.b16 %v268
  %v292 = vpack.c.b16 %v285, %v284
  %v293 = vpack.c.b16 %v287, %v286
  %v294 = vpack.c.b16 %v289, %v288
  %v295 = vpack.c.b16 %v291, %v290
  %v301 = vsel %vm203, %v260, 0
  %303 = vmatprep.subr.bf16.mxu0 0
  %304 = vmatpush1.bf16.msra.mxu0 0
  %305 = vmatprep.subr.bf16.mxu0 0
  %306 = vmatpush1.bf16.msra.mxu0 0
  %307 = vmatprep.subr.bf16.mxu0 0
  %308 = vmatpush1.bf16.msra.mxu0 0
  %309 = vmatprep.subr.bf16.mxu0 0
  %310 = vmatpush1.bf16.msra.mxu0 0
  %311 = vmatprep.subr.bf16.mxu0 0
  %312 = vmatpush1.bf16.msra.mxu0 %v295
  %313 = vmatprep.subr.bf16.mxu0 0
  %314 = vmatpush1.bf16.msra.mxu0 %v294
  %315 = vmatprep.subr.bf16.mxu0 0
  %316 = vmatpush1.bf16.msra.mxu0 %v293
  %317 = vmatprep.subr.bf16.mxu0 0
  %318 = vmatpush1.bf16.msra.mxu0 %v292
  %319 = vmatprep.subr.bf16.mxu0 0
  %320 = vmatpush2.bf16.msra.mxu0 0
  %321 = vmatprep.subr.bf16.mxu0 0
  %322 = vmatpush2.bf16.msra.mxu0 0
  %323 = vmatprep.subr.bf16.mxu0 0
  %324 = vmatpush2.bf16.msra.mxu0 0
  %325 = vmatprep.subr.bf16.mxu0 0
  %326 = vmatpush2.bf16.msra.mxu0 0
  %327 = vmatprep.subr.bf16.mxu0 0
  %328 = vmatpush2.bf16.msra.mxu0 0
  %329 = vmatprep.subr.bf16.mxu0 0
  %330 = vmatpush2.bf16.msra.mxu0 0
  %331 = vmatprep.subr.bf16.mxu0 0
  %332 = vmatpush2.bf16.msra.mxu0 0
  %333 = vmatprep.subr.bf16.mxu0 0
  %334 = vmatpush2.bf16.msra.mxu0 0
  %335 = vmatprep.mubr.bf16.mxu0 0
  %336 = vmatmul.mubr.bf16.gmra.mxu0 %v301
  %v337 = vpop.f32.mrf.mxu0
  %v338 = vadd.f32 %v274, %v337
  %v339 = vpop.f32.mrf.mxu0
  %v340 = vpop.f32.mrf.mxu0
  %v341 = vadd.f32 %v274, %v340
  %v342 = vpop.f32.mrf.mxu0
  %343 = vdwg.mxu0
  %vm344 = vcmask 15360
  %v345 = vsel %vm344, %v338, inf
  %346 = vmin.xlane.f32.xlu0 %v345
  %v347 = vpop.xlane.xlu0 %346
  %v348 = vsel %vm344, %v341, inf
  %349 = vmin.xlane.f32.xlu0 %v348
  %v350 = vpop.xlane.xlu0 %349
  %vm351 = vcmask 7168
  %352 = vst.msk [vmem:[%s9] sm:$0xff] %vm351, %v347
  %353 = vst.msk [vmem:[%s9 + $0x8] sm:$0xff] %vm351, %v350
  // Predicated region
  $region38: #{tpu_custom_call.1} parent=0 // pred_check
    _
  $region39: #{tpu_custom_call.1} parent=0 // pred_check_branch
    %355 = sbr.rel (0) target = $region41
  $region40: #{tpu_custom_call.1} parent=0 // pred_region
    _
  $region41: #{tpu_custom_call.1} parent=0 // pred_fallthru
    _
  // Predicated region
  $region42: #{tpu_custom_call.1} parent=0 // pred_check
    _
  $region43: #{tpu_custom_call.1} parent=0 // pred_check_branch
    %357 = sbr.rel (0) target = $region45
  $region44: #{tpu_custom_call.1} parent=0 // pred_region
    _
  $region45: #{tpu_custom_call.1} parent=0 // pred_fallthru
    _

</llo_original>
